<compile_context>
chip_gen: v6e
topology: v6e:2x2x1
jax: 0.10.0
libtpu: 0.0.40
codegen_flags: <defaults>
</compile_context>

<pallas_src>
import functools

import jax
import jax.numpy as jnp
from jax import lax
from jax.experimental import pallas as pl
from jax.experimental.pallas import tpu as pltpu

_LANE = 128
_SUBLANE = 8


def _round_up(x, m):
    return ((x + m - 1) // m) * m


def _guess_num_tensorcores():
    """Best-effort: 2 TensorCores per device on megacore chips (v4 / v7x)."""
    try:
        kind = jax.devices()[0].device_kind.lower()
    except Exception:
        return 1
    return 2 if ("v4" in kind or "v7" in kind) else 1


def _ascell_seq_kernel(h0_ref, xv_ref, a_hbm_ref, o_ref, h_scr, a_scr, *,
                       eps, block_t):
    """One grid step = `block_t` RNN timesteps for one batch tile.

    grid = (batch_tiles, time_blocks); time iterates innermost so the hidden
    state carries in VMEM scratch `h_scr`.  The recurrent weight A is copied
    once per batch tile from HBM into the single-buffered scratch `a_scr`.
    """
    t_blk = pl.program_id(1)

    @pl.when(t_blk == 0)
    def _init():
        pltpu.sync_copy(a_hbm_ref, a_scr)          # resident weight, 1 copy
        h_scr[...] = h0_ref[...].astype(jnp.float32)

    h = h_scr[...]                                  # [tb, Wp]  f32 carry
    a = a_scr[...]                                  # [Wp, Wp]  mxu dtype

    # Fully-unrolled time micro-loop (block_t is a small static int).
    # TODO(synk): only tanh is supported; the PyTorch module takes a generic
    # `activation` callable.
    for i in range(block_t):
        pre = jnp.dot(h.astype(a.dtype), a,
                      preferred_element_type=jnp.float32)      # MXU, f32 acc
        pre = pre + xv_ref[i].astype(jnp.float32)              # x@V + b (hoisted)
        h = h + eps * jnp.tanh(pre)                            # EUP + VPU, f32
        o_ref[i] = h.astype(o_ref.dtype)

    h_scr[...] = h


def ascell_scan(x_seq, state0, W, V, b, *, gamma, eps,
                mxu_dtype=jnp.bfloat16, stream_dtype=None, out_dtype=None,
                block_t=8, block_b=None, num_cores=None):
    """Run the ASCell recurrence over a whole sequence in one Pallas kernel.

    x_seq: [T, B, ind]   state0: [B, width]   ->  all hidden states [T, B, width]
    """
    T, B, _ind = x_seq.shape
    width = state0.shape[-1]
    mxu_dtype = jnp.dtype(mxu_dtype)
    stream_dtype = jnp.dtype(mxu_dtype if stream_dtype is None else stream_dtype)
    out_dtype = jnp.dtype(state0.dtype if out_dtype is None else out_dtype)

    # ---- wrapper-side fusion (done once, not per step) ---------------------
    Wf = W.astype(jnp.float32)
    A = Wf - Wf.T - gamma * jnp.eye(width, dtype=jnp.float32)
    # Input projection hoisted out of the serial recurrence: one big parallel
    # matmul over T*B rows (high precision so the recurrence sees exact xv).
    xv = jnp.einsum('tbi,iw->tbw', x_seq.astype(jnp.float32),
                    V.astype(jnp.float32),
                    precision=lax.Precision.HIGHEST)
    xv = xv + b.astype(jnp.float32)

    # ---- tiling -------------------------------------------------------------
    width_p = _round_up(width, _LANE)
    if num_cores is None:
        num_cores = _guess_num_tensorcores()
    B_sub = _round_up(B, _SUBLANE)
    if block_b is None:
        if num_cores > 1 and B_sub >= 2 * _SUBLANE:
            # keep >= 2 batch tiles so the "parallel" axis splits across TCs
            block_b = _round_up(-(-B_sub // num_cores), _SUBLANE)
        else:
            block_b = B_sub                     # single TC: fill the MXU M dim
        block_b = min(block_b, 256)
    B_p = _round_up(B, block_b)
    block_t = max(1, min(int(block_t), T))
    T_p = _round_up(T, block_t)

    # ---- padded operands (padded lanes AND padded rows stay exactly zero) --
    A_p = jnp.zeros((width_p, width_p), jnp.float32).at[:width, :width].set(A)
    A_p = A_p.astype(mxu_dtype)
    xv_p = jnp.zeros((T_p, B_p, width_p), stream_dtype)
    xv_p = xv_p.at[:T, :B, :width].set(xv.astype(stream_dtype))
    h0_p = jnp.zeros((B_p, width_p), jnp.float32)
    h0_p = h0_p.at[:B, :width].set(state0.astype(jnp.float32))

    # ---- generation- and size-aware VMEM budget -----------------------------
    def _esz(dt):
        return jnp.dtype(dt).itemsize

    stream_bytes = block_t * block_b * width_p * (_esz(stream_dtype) + _esz(out_dtype))
    h0_bytes = block_b * width_p * 4
    scratch_bytes = block_b * width_p * 4 + width_p * width_p * _esz(mxu_dtype)
    needed = 2 * (stream_bytes + h0_bytes) + scratch_bytes + (2 << 20)
    try:
        vmem_cap = int(pltpu.get_tpu_info().vmem_capacity_bytes)
    except Exception:
        vmem_cap = 64 << 20                     # conservative (v7x-sized)
    vmem_limit = int(min(max(needed, 16 << 20), (vmem_cap * 3) // 4))

    kernel = functools.partial(_ascell_seq_kernel, eps=float(eps),
                               block_t=block_t)

    out_p = pl.pallas_call(
        kernel,
        out_shape=jax.ShapeDtypeStruct((T_p, B_p, width_p), out_dtype),
        grid=(B_p // block_b, T_p // block_t),
        in_specs=[
            pl.BlockSpec((block_b, width_p), lambda bi, tb: (bi, 0)),      # h0
            pl.BlockSpec((block_t, block_b, width_p),
                         lambda bi, tb: (tb, bi, 0)),                      # xv
            pl.BlockSpec(memory_space=pl.ANY),                             # A (HBM)
        ],
        out_specs=pl.BlockSpec((block_t, block_b, width_p),
                               lambda bi, tb: (tb, bi, 0)),
        scratch_shapes=[
            pltpu.VMEM((block_b, width_p), jnp.float32),   # hidden-state carry
            pltpu.VMEM((width_p, width_p), mxu_dtype),     # resident A (1 buf)
        ],
        compiler_params=pltpu.CompilerParams(
            dimension_semantics=("parallel", "arbitrary"),
            vmem_limit_bytes=vmem_limit),
    )(h0_p, xv_p, A_p)

    if T_p == T and B_p == B and width_p == width:
        return out_p                         # no extra HBM copy when unpadded
    return out_p[:T, :B, :width]


def ascell_forward(inputs, state, W, V, b, *, gamma, eps, **kwargs):
    """Single ASCell step (exactly the PyTorch module's forward)."""
    return ascell_scan(inputs[None], state, W, V, b,
                       gamma=gamma, eps=eps, **kwargs)[0]


# ----------------------------------------------------------------------------
# reference & self-test
# ----------------------------------------------------------------------------
def _xavier_uniform(key, shape, dtype=jnp.float32):
    fan_in, fan_out = shape
    bound = (6.0 / (fan_in + fan_out)) ** 0.5
    return jax.random.uniform(key, shape, dtype, minval=-bound, maxval=bound)


def _ref_step(x, h, W, V, b, gamma, eps):
    return h + eps * jnp.tanh(h @ (W - W.T) - gamma * h + x @ V + b)


def _ref_seq(x_seq, h0, W, V, b, gamma, eps):
    def body(h, x):
        h_new = _ref_step(x, h, W, V, b, gamma, eps)
        return h_new, h_new
    _, seq = lax.scan(body, h0, x_seq)
    return seq


if __name__ == "__main__":
    # Match the PyTorch f32 reference semantics for the pure-JAX checks.
    jax.config.update("jax_default_matmul_precision", "highest")

    ind, width = 16, 32
    gamma, eps = 0.01, 0.1
    B, T = 8, 12

    key = jax.random.PRNGKey(0)
    k_w, k_v, k_x, k_h, k_x2, k_h2 = jax.random.split(key, 6)

    W = _xavier_uniform(k_w, (width, width))
    V = _xavier_uniform(k_v, (ind, width))
    b = jnp.zeros((width,), jnp.float32)

    x_seq = jax.random.normal(k_x, (T, B, ind), jnp.float32)
    h0 = jax.random.normal(k_h, (B, width), jnp.float32)

    # --- single cell step (the module's forward), full-f32 MXU path ---------
    out_step = ascell_forward(x_seq[0], h0, W, V, b, gamma=gamma, eps=eps,
                              mxu_dtype=jnp.float32)
    jax.block_until_ready(out_step)
    ref_step = _ref_step(x_seq[0], h0, W, V, b, gamma, eps)
    assert jnp.allclose(out_step, ref_step, atol=1e-5, rtol=1e-5), \
        "single-step mismatch vs reference"

    # --- full sequence, f32 MXU path (time blocked: T=12 -> padded blocks) --
    out_seq = ascell_scan(x_seq, h0, W, V, b, gamma=gamma, eps=eps,
                          mxu_dtype=jnp.float32)
    jax.block_until_ready(out_seq)
    ref_seq = _ref_seq(x_seq, h0, W, V, b, gamma, eps)
    assert jnp.allclose(out_seq, ref_seq, atol=5e-4, rtol=5e-4), \
        "sequence mismatch vs reference (f32)"

    # --- default bf16-MXU path (f32 carry/tail); loose tolerance ------------
    out_bf16 = ascell_scan(x_seq, h0, W, V, b, gamma=gamma, eps=eps)
    jax.block_until_ready(out_bf16)
    assert float(jnp.max(jnp.abs(out_bf16 - ref_seq))) < 0.1, \
        "bf16 MXU path diverged"

    # --- multiple batch tiles + exact time blocking (B=24, block_b=8) -------
    B2 = 24
    x_seq2 = jax.random.normal(k_x2, (T, B2, ind), jnp.float32)
    h02 = jax.random.normal(k_h2, (B2, width), jnp.float32)
    out_seq2 = ascell_scan(x_seq2, h02, W, V, b, gamma=gamma, eps=eps,
                           mxu_dtype=jnp.float32, block_b=8, block_t=4)
    jax.block_until_ready(out_seq2)
    ref_seq2 = _ref_seq(x_seq2, h02, W, V, b, gamma, eps)
    assert jnp.allclose(out_seq2, ref_seq2, atol=5e-4, rtol=5e-4), \
        "multi-batch-tile sequence mismatch vs reference"

    print("KERNEL_OK")
</pallas_src>

<mosaic_0001>
module attributes {stable_mosaic.version = 11 : i64} {
  func.func @_ascell_seq_kernel(%arg0: i32, %arg1: i32, %arg2: memref<8x128xf32, #tpu.memory_space<vmem>>, %arg3: memref<1x8x128xf32, #tpu.memory_space<vmem>>, %arg4: memref<128x128xf32, #tpu.memory_space<any>>, %arg5: memref<1x8x128xf32, #tpu.memory_space<vmem>>, %arg6: memref<8x128xf32, #tpu.memory_space<vmem>>, %arg7: memref<128x128xf32, #tpu.memory_space<vmem>>) attributes {dimension_semantics = [#tpu.dimension_semantics<parallel>, #tpu.dimension_semantics<arbitrary>], iteration_bounds = array<i64: 1, 1>, scalar_prefetch = 0 : i64, scratch_operands = 2 : i64, tpu.core_type = #tpu.core_type<tc>, window_params = [{transform_indices = @transform_0, window_bounds = array<i64: 8, 128>}, {transform_indices = @transform_1, window_bounds = array<i64: 1, 8, 128>}, {}, {transform_indices = @transform_3, window_bounds = array<i64: 1, 8, 128>}]} {
    %c0_i32 = arith.constant 0 : i32
    %0 = arith.cmpi eq, %arg1, %c0_i32 : i32
    %1 = arith.extui %0 : i1 to i32
    %c0_i32_0 = arith.constant 0 : i32
    %2 = arith.cmpi ne, %1, %c0_i32_0 : i32
    scf.if %2 {
      "tpu.region"() ({
        %19 = tpu.sem_alloc : memref<!tpu.dma_semaphore, #tpu.memory_space<semaphore_mem>>
        tpu.enqueue_dma source(%arg4 : memref<128x128xf32, #tpu.memory_space<any>>) target(%arg7 : memref<128x128xf32, #tpu.memory_space<vmem>>) target_semaphore(%19 : memref<!tpu.dma_semaphore, #tpu.memory_space<semaphore_mem>>)
        tpu.wait_dma2 semaphore(%19 : memref<!tpu.dma_semaphore, #tpu.memory_space<semaphore_mem>>) src(%arg4 : memref<128x128xf32, #tpu.memory_space<any>>) dst(%arg7 : memref<128x128xf32, #tpu.memory_space<vmem>>)
        tpu.yield
      }) : () -> ()
      %c0_13 = arith.constant 0 : index
      %c0_14 = arith.constant 0 : index
      %17 = vector.load %arg2[%c0_13, %c0_14] : memref<8x128xf32, #tpu.memory_space<vmem>>, vector<8x128xf32>
      %c0_15 = arith.constant 0 : index
      %c0_16 = arith.constant 0 : index
      %18 = vector.load %arg6[%c0_15, %c0_16] : memref<8x128xf32, #tpu.memory_space<vmem>>, vector<8x128xf32>
      tpu.vector_store %arg6[%c0_15, %c0_16], %17 {strides = array<i32>} : memref<8x128xf32, #tpu.memory_space<vmem>>, vector<8x128xf32>,
    } else {
    }
    %c0 = arith.constant 0 : index
    %c0_1 = arith.constant 0 : index
    %3 = vector.load %arg6[%c0, %c0_1] : memref<8x128xf32, #tpu.memory_space<vmem>>, vector<8x128xf32>
    %c0_2 = arith.constant 0 : index
    %c0_3 = arith.constant 0 : index
    %4 = vector.load %arg7[%c0_2, %c0_3] : memref<128x128xf32, #tpu.memory_space<vmem>>, vector<128x128xf32>
    %cst = arith.constant dense<0.000000e+00> : vector<8x128xf32>
    %5 = tpu.matmul %3, %4, %cst {dimension_numbers = #tpu.dot_dimension_numbers<[1], [0], [0], [1], [0, 0, 1, 1], [], []>, precision = #tpu.contract_precision<fp32>} : vector<8x128xf32>, vector<128x128xf32>, vector<8x128xf32> -> vector<8x128xf32>
    %c0_4 = arith.constant 0 : index
    %c0_5 = arith.constant 0 : index
    %c0_6 = arith.constant 0 : index
    %6 = vector.load %arg3[%c0_4, %c0_5, %c0_6] : memref<1x8x128xf32, #tpu.memory_space<vmem>>, vector<1x8x128xf32>
    %7 = vector.shape_cast %6 : vector<1x8x128xf32> to vector<8x128xf32>
    %8 = arith.addf %5, %7 : vector<8x128xf32>
    %9 = math.tanh %8 : vector<8x128xf32>
    %cst_7 = arith.constant 1.000000e-01 : f32
    %10 = vector.broadcast %cst_7 : f32 to vector<8x128xf32>
    %11 = arith.mulf %10, %9 : vector<8x128xf32>
    %12 = arith.addf %3, %11 : vector<8x128xf32>
    %c0_8 = arith.constant 0 : index
    %c0_9 = arith.constant 0 : index
    %c0_10 = arith.constant 0 : index
    %13 = vector.load %arg5[%c0_8, %c0_9, %c0_10] : memref<1x8x128xf32, #tpu.memory_space<vmem>>, vector<1x8x128xf32>
    %14 = vector.shape_cast %13 : vector<1x8x128xf32> to vector<8x128xf32>
    %15 = vector.shape_cast %12 : vector<8x128xf32> to vector<1x8x128xf32>
    tpu.vector_store %arg5[%c0_8, %c0_9, %c0_10], %15 {strides = array<i32>} : memref<1x8x128xf32, #tpu.memory_space<vmem>>, vector<1x8x128xf32>,
    %c0_11 = arith.constant 0 : index
    %c0_12 = arith.constant 0 : index
    %16 = vector.load %arg6[%c0_11, %c0_12] : memref<8x128xf32, #tpu.memory_space<vmem>>, vector<8x128xf32>
    tpu.vector_store %arg6[%c0_11, %c0_12], %12 {strides = array<i32>} : memref<8x128xf32, #tpu.memory_space<vmem>>, vector<8x128xf32>,
    return
  }
  func.func @transform_0(%arg0: i32, %arg1: i32) -> (i32, i32) {
    %c0_i32 = arith.constant 0 : i32
    %c0_i32_0 = arith.constant 0 : i32
    return %arg0, %c0_i32 : i32, i32
  }
  func.func @transform_1(%arg0: i32, %arg1: i32) -> (i32, i32, i32) {
    %c0_i32 = arith.constant 0 : i32
    %c0_i32_0 = arith.constant 0 : i32
    return %arg1, %arg0, %c0_i32 : i32, i32, i32
  }
  func.func @transform_3(%arg0: i32, %arg1: i32) -> (i32, i32, i32) {
    %c0_i32 = arith.constant 0 : i32
    %c0_i32_0 = arith.constant 0 : i32
    return %arg1, %arg0, %c0_i32 : i32, i32, i32
  }
}

</mosaic_0001>

<llo_original>
// kernel: tpu_custom_call.1
$region0: #{tpu_custom_call.1}
  #allocation0 [shape = 'u32[]', space=smem, size = 0x4, offset = 0x4, fixed_abs, tag = 'smem constant byte address 0x4 - core index']
  #allocation1 [shape = 'u32[144,128]{1,0:T(1,128)}', space=vmem, size = 0x12000, scoped, tag = 'internal scratch']
  #allocation2 [shape = 'f32[8,128]{1,0:T(8,128)}', space=vmem, size = 0x1000, scoped, tag = 'scratch operand']
  #allocation3 [shape = 'f32[128,128]{1,0:T(8,128)}', space=vmem, size = 0x10000, scoped, tag = 'scratch operand']
  #allocation11 [shape = 's32[]', space=sflag, size = 0x4, offset = 0, fixed_abs, tag = 'sflag constant byte address 0x0 - dummy sync flag']
  #allocation12 [shape = 's32[]', space=sflag, size = 0x4, offset = 0, fixed_abs, tag = 'sflag constant byte address 0x0 - dummy sync flag']
  #allocation13 [shape = 'u32[]', space=smem, size = 0x4, offset = 0x44, fixed_abs, tag = 'smem constant byte address 0x44 - assertion arg 0']
  #allocation14 [shape = 'u32[]', space=smem, size = 0x4, offset = 0x48, fixed_abs, tag = 'smem constant byte address 0x48 - assertion arg 1']
  %s0 = inlined_call_operand.hbm [shape: f32[8,128], index: 0, kind: input, shape index: {}]
  %s1 = inlined_call_operand.hbm [shape: f32[1,8,128], index: 1, kind: input, shape index: {}]
  %s2 = inlined_call_operand.hbm [shape: f32[128,128], index: 2, kind: input, shape index: {}]
  %s3 = inlined_call_operand.hbm [shape: f32[1,8,128], index: 3, kind: output, shape index: {}]
  %s4 = sld [smem:[#allocation0]]
  $region35: #{tpu_custom_call.1} parent=0
    _
  %s6 = ssub.s32 1, %s4
  %s7 = scalar_select 0, %s6, %s4
  $region1: #{tpu_custom_call.1} parent=0
    #allocation4 [shape = 'u8[4096]{0}', space=vmem, size = 0x1000, scoped, tag = 'input window, operand 0, single buffered']
    #allocation5 [shape = 's32[1]{0}', space=sflag, size = 0x4, scoped, tag = 'scoped memory for tpu_custom_call.1']
    #allocation6 [shape = 's32[1]{0}', space=sflag, size = 0x4, scoped, tag = 'scoped memory for tpu_custom_call.1']
    #allocation7 [shape = 'u8[4096]{0}', space=vmem, size = 0x1000, scoped, tag = 'input window, operand 1, single buffered']
    #allocation8 [shape = 's32[1]{0}', space=sflag, size = 0x4, scoped, tag = 'scoped memory for tpu_custom_call.1']
    #allocation9 [shape = 'u8[4096]{0}', space=vmem, size = 0x1000, scoped, tag = 'output window, operand 0, single buffered']
    %8 = vsyncpa [#allocation5], 0
    %9 = vsyncpa [#allocation8], 0
    %10 = vsyncpa [#allocation6], 0
    // Predicated region
    $region2: #{tpu_custom_call.1} parent=1 // pred_check
      _
    $region3: #{tpu_custom_call.1} parent=1 // pred_check_branch
      %12 = sbr.rel (0) target = $region5
    $region4: #{tpu_custom_call.1} parent=1 // pred_region
      %s14 = ssub.s32 128, 128
      %15 = vsyncadd [#allocation5], %s14
      %s17 = sshll.u32 [#allocation4], 4
      %s18 = int_to_ptr.vmem [resolvable:$true] %s17
      %20 = dma.hbm_to_vmem [thread:$0]  %s0, 128, %s18, [#allocation5]
    $region5: #{tpu_custom_call.1} parent=1 // pred_fallthru
      _
    // Predicated region
    $region6: #{tpu_custom_call.1} parent=1 // pred_check
      _
    $region7: #{tpu_custom_call.1} parent=1 // pred_check_branch
      %22 = sbr.rel (0) target = $region9
    $region8: #{tpu_custom_call.1} parent=1 // pred_region
      %s24 = ssub.s32 128, 128
      %25 = vsyncadd [#allocation8], %s24
      %s27 = sshll.u32 [#allocation7], 4
      %s28 = int_to_ptr.vmem [resolvable:$true] %s27
      %30 = dma.hbm_to_vmem [thread:$0]  %s1, 128, %s28, [#allocation8]
    $region9: #{tpu_custom_call.1} parent=1 // pred_fallthru
      _
    // Predicated region
    $region10: #{tpu_custom_call.1} parent=1 // pred_check
      _
    $region11: #{tpu_custom_call.1} parent=1 // pred_check_branch
      %32 = sbr.rel (0) target = $region13
    $region12: #{tpu_custom_call.1} parent=1 // pred_region
      %33 = dma.done [#allocation5], 128
    $region13: #{tpu_custom_call.1} parent=1 // pred_fallthru
      _
    // Predicated region
    $region14: #{tpu_custom_call.1} parent=1 // pred_check
      _
    $region15: #{tpu_custom_call.1} parent=1 // pred_check_branch
      %35 = sbr.rel (0) target = $region17
    $region16: #{tpu_custom_call.1} parent=1 // pred_region
      %36 = dma.done [#allocation8], 128
    $region17: #{tpu_custom_call.1} parent=1 // pred_fallthru
      _
    %p37 = scmp.eq.s32.totalorder 0, 0
    // Predicated region
    $region18: #{tpu_custom_call.1} parent=1 // pred_check
      %p38 = pneg %p37
    $region19: #{tpu_custom_call.1} parent=1 // pred_check_branch
      %40 = sbr.rel (%p38) target = $region21
    $region20: #{tpu_custom_call.1} parent=1 // pred_region
      $region22: #{tpu_custom_call.1} parent=20
        #allocation10 [shape = 's32[1]{0}', space=sflag, size = 0x4, scoped, tag = 'scoped memory for tpu_custom_call.1']
        // Predicated region
        $region23: #{tpu_custom_call.1} parent=22 // pred_check
          _
        $region24: #{tpu_custom_call.1} parent=22 // pred_check_branch
          %42 = sbr.rel target = $region26
        $region25: #{tpu_custom_call.1} parent=22 // pred_region
          %43 = sst [smem:[#allocation13]] [#allocation12]
          %44 = sst [smem:[#allocation14]] [#allocation11]
        $region26: #{tpu_custom_call.1} parent=22 // pred_fallthru
          _
        %46 = shalt.err (0)
        %s48 = sshll.u32 [#allocation3], 4
        %s49 = int_to_ptr.vmem [resolvable:$true] %s48
        %51 = dma.hbm_to_vmem [thread:$0]  %s2, 2048, %s49, [#allocation10]
        %s52 = smul.u32 128, 1
        %s53 = sshll.u32 %s52, 4
        %54 = dma.done [#allocation10], %s53
      %v55 = vld [vmem:[#allocation4] sm:$0xff]
      %56 = vst [vmem:[#allocation2] sm:$0xff] %v55
    $region21: #{tpu_custom_call.1} parent=1 // pred_fallthru
      _
    %v57 = vld [vmem:[#allocation2] sm:$0xff]
    %v58 = vld [vmem:[#allocation3] sm:$0xff]
    %v59 = vld [vmem:[#allocation3 + $0x8] sm:$0xff]
    %v60 = vld [vmem:[#allocation3 + $0x10] sm:$0xff]
    %v61 = vld [vmem:[#allocation3 + $0x18] sm:$0xff]
    %v62 = vld [vmem:[#allocation3 + $0x20] sm:$0xff]
    %v63 = vld [vmem:[#allocation3 + $0x28] sm:$0xff]
    %v64 = vld [vmem:[#allocation3 + $0x30] sm:$0xff]
    %v65 = vld [vmem:[#allocation3 + $0x38] sm:$0xff]
    %v66 = vld [vmem:[#allocation3 + $0x40] sm:$0xff]
    %v67 = vld [vmem:[#allocation3 + $0x48] sm:$0xff]
    %v68 = vld [vmem:[#allocation3 + $0x50] sm:$0xff]
    %v69 = vld [vmem:[#allocation3 + $0x58] sm:$0xff]
    %v70 = vld [vmem:[#allocation3 + $0x60] sm:$0xff]
    %v71 = vld [vmem:[#allocation3 + $0x68] sm:$0xff]
    %v72 = vld [vmem:[#allocation3 + $0x70] sm:$0xff]
    %v73 = vld [vmem:[#allocation3 + $0x78] sm:$0xff]
    %v74 = vld [vmem:[#allocation7] sm:$0xff]
    %75 = vmatprep.subr.mxu0 0.0
    %v76 = vand.u32 %v73, 4294901760
    %77 = vmatpush1.msra.mxu0 %v76
    %78 = vmatprep.subr.mxu0 0.0
    %v79 = vand.u32 %v72, 4294901760
    %80 = vmatpush1.msra.mxu0 %v79
    %81 = vmatprep.subr.mxu0 0.0
    %v82 = vand.u32 %v71, 4294901760
    %83 = vmatpush1.msra.mxu0 %v82
    %84 = vmatprep.subr.mxu0 0.0
    %v85 = vand.u32 %v70, 4294901760
    %86 = vmatpush1.msra.mxu0 %v85
    %87 = vmatprep.subr.mxu0 0.0
    %v88 = vand.u32 %v69, 4294901760
    %89 = vmatpush1.msra.mxu0 %v88
    %90 = vmatprep.subr.mxu0 0.0
    %v91 = vand.u32 %v68, 4294901760
    %92 = vmatpush1.msra.mxu0 %v91
    %93 = vmatprep.subr.mxu0 0.0
    %v94 = vand.u32 %v67, 4294901760
    %95 = vmatpush1.msra.mxu0 %v94
    %96 = vmatprep.subr.mxu0 0.0
    %v97 = vand.u32 %v66, 4294901760
    %98 = vmatpush1.msra.mxu0 %v97
    %99 = vmatprep.subr.mxu0 0.0
    %v100 = vand.u32 %v65, 4294901760
    %101 = vmatpush1.msra.mxu0 %v100
    %102 = vmatprep.subr.mxu0 0.0
    %v103 = vand.u32 %v64, 4294901760
    %104 = vmatpush1.msra.mxu0 %v103
    %105 = vmatprep.subr.mxu0 0.0
    %v106 = vand.u32 %v63, 4294901760
    %107 = vmatpush1.msra.mxu0 %v106
    %108 = vmatprep.subr.mxu0 0.0
    %v109 = vand.u32 %v62, 4294901760
    %110 = vmatpush1.msra.mxu0 %v109
    %111 = vmatprep.subr.mxu0 0.0
    %v112 = vand.u32 %v61, 4294901760
    %113 = vmatpush1.msra.mxu0 %v112
    %114 = vmatprep.subr.mxu0 0.0
    %v115 = vand.u32 %v60, 4294901760
    %116 = vmatpush1.msra.mxu0 %v115
    %117 = vmatprep.subr.mxu0 0.0
    %v118 = vand.u32 %v59, 4294901760
    %119 = vmatpush1.msra.mxu0 %v118
    %120 = vmatprep.subr.mxu0 0.0
    %v121 = vand.u32 %v58, 4294901760
    %122 = vmatpush1.msra.mxu0 %v121
    %123 = vmatprep.subr.mxu0 0.0
    %124 = vmatpush2.msra.mxu0 0.0
    %125 = vmatprep.subr.mxu0 0.0
    %126 = vmatpush2.msra.mxu0 0.0
    %127 = vmatprep.subr.mxu0 0.0
    %128 = vmatpush2.msra.mxu0 0.0
    %129 = vmatprep.subr.mxu0 0.0
    %130 = vmatpush2.msra.mxu0 0.0
    %131 = vmatprep.subr.mxu0 0.0
    %132 = vmatpush2.msra.mxu0 0.0
    %133 = vmatprep.subr.mxu0 0.0
    %134 = vmatpush2.msra.mxu0 0.0
    %135 = vmatprep.subr.mxu0 0.0
    %136 = vmatpush2.msra.mxu0 0.0
    %137 = vmatprep.subr.mxu0 0.0
    %138 = vmatpush2.msra.mxu0 0.0
    %139 = vmatprep.subr.mxu0 0.0
    %140 = vmatpush2.msra.mxu0 0.0
    %141 = vmatprep.subr.mxu0 0.0
    %142 = vmatpush2.msra.mxu0 0.0
    %143 = vmatprep.subr.mxu0 0.0
    %144 = vmatpush2.msra.mxu0 0.0
    %145 = vmatprep.subr.mxu0 0.0
    %146 = vmatpush2.msra.mxu0 0.0
    %147 = vmatprep.subr.mxu0 0.0
    %148 = vmatpush2.msra.mxu0 0.0
    %149 = vmatprep.subr.mxu0 0.0
    %150 = vmatpush2.msra.mxu0 0.0
    %151 = vmatprep.subr.mxu0 0.0
    %152 = vmatpush2.msra.mxu0 0.0
    %153 = vmatprep.subr.mxu0 0.0
    %154 = vmatpush2.msra.mxu0 0.0
    %155 = vmatprep.mubr.f32.mxu0 0.0
    %v156 = vand.u32 %v57, 4294901760
    %v157 = vsub.f32 %v57, %v156
    %v158 = vand.u32 %v157, 4294901760
    %v159 = vsub.f32 %v157, %v158
    %v160 = vand.u32 %v159, 4294901760
    %161 = vmatmul.mubr.f32.gmra.mxu0 %v160
    %v162 = vpop.f32.mrf.mxu0
    %v163 = vadd.f32 %v74, %v162
    %v164 = vpop.f32.mrf.mxu0
    %165 = vdwg.mxu0
    %166 = vmatprep.subr.mxu0 0.0
    %v167 = vand.u32 %v73, 4294901760
    %v168 = vsub.f32 %v73, %v167
    %v169 = vand.u32 %v168, 4294901760
    %v170 = vsub.f32 %v168, %v169
    %v171 = vand.u32 %v170, 4294901760
    %172 = vmatpush1.msra.mxu0 %v171
    %173 = vmatprep.subr.mxu0 0.0
    %v174 = vand.u32 %v72, 4294901760
    %v175 = vsub.f32 %v72, %v174
    %v176 = vand.u32 %v175, 4294901760
    %v177 = vsub.f32 %v175, %v176
    %v178 = vand.u32 %v177, 4294901760
    %179 = vmatpush1.msra.mxu0 %v178
    %180 = vmatprep.subr.mxu0 0.0
    %v181 = vand.u32 %v71, 4294901760
    %v182 = vsub.f32 %v71, %v181
    %v183 = vand.u32 %v182, 4294901760
    %v184 = vsub.f32 %v182, %v183
    %v185 = vand.u32 %v184, 4294901760
    %186 = vmatpush1.msra.mxu0 %v185
    %187 = vmatprep.subr.mxu0 0.0
    %v188 = vand.u32 %v70, 4294901760
    %v189 = vsub.f32 %v70, %v188
    %v190 = vand.u32 %v189, 4294901760
    %v191 = vsub.f32 %v189, %v190
    %v192 = vand.u32 %v191, 4294901760
    %193 = vmatpush1.msra.mxu0 %v192
    %194 = vmatprep.subr.mxu0 0.0
    %v195 = vand.u32 %v69, 4294901760
    %v196 = vsub.f32 %v69, %v195
    %v197 = vand.u32 %v196, 4294901760
    %v198 = vsub.f32 %v196, %v197
    %v199 = vand.u32 %v198, 4294901760
    %200 = vmatpush1.msra.mxu0 %v199
    %201 = vmatprep.subr.mxu0 0.0
    %v202 = vand.u32 %v68, 4294901760
    %v203 = vsub.f32 %v68, %v202
    %v204 = vand.u32 %v203, 4294901760
    %v205 = vsub.f32 %v203, %v204
    %v206 = vand.u32 %v205, 4294901760
    %207 = vmatpush1.msra.mxu0 %v206
    %208 = vmatprep.subr.mxu0 0.0
    %v209 = vand.u32 %v67, 4294901760
    %v210 = vsub.f32 %v67, %v209
    %v211 = vand.u32 %v210, 4294901760
    %v212 = vsub.f32 %v210, %v211
    %v213 = vand.u32 %v212, 4294901760
    %214 = vmatpush1.msra.mxu0 %v213
    %215 = vmatprep.subr.mxu0 0.0
    %v216 = vand.u32 %v66, 4294901760
    %v217 = vsub.f32 %v66, %v216
    %v218 = vand.u32 %v217, 4294901760
    %v219 = vsub.f32 %v217, %v218
    %v220 = vand.u32 %v219, 4294901760
    %221 = vmatpush1.msra.mxu0 %v220
    %222 = vmatprep.subr.mxu0 0.0
    %v223 = vand.u32 %v65, 4294901760
    %v224 = vsub.f32 %v65, %v223
    %v225 = vand.u32 %v224, 4294901760
    %v226 = vsub.f32 %v224, %v225
    %v227 = vand.u32 %v226, 4294901760
    %228 = vmatpush1.msra.mxu0 %v227
    %229 = vmatprep.subr.mxu0 0.0
    %v230 = vand.u32 %v64, 4294901760
    %v231 = vsub.f32 %v64, %v230
    %v232 = vand.u32 %v231, 4294901760
    %v233 = vsub.f32 %v231, %v232
    %v234 = vand.u32 %v233, 4294901760
    %235 = vmatpush1.msra.mxu0 %v234
    %236 = vmatprep.subr.mxu0 0.0
    %v237 = vand.u32 %v63, 4294901760
    %v238 = vsub.f32 %v63, %v237
    %v239 = vand.u32 %v238, 4294901760
    %v240 = vsub.f32 %v238, %v239
    %v241 = vand.u32 %v240, 4294901760
    %242 = vmatpush1.msra.mxu0 %v241
    %243 = vmatprep.subr.mxu0 0.0
    %v244 = vand.u32 %v62, 4294901760
    %v245 = vsub.f32 %v62, %v244
    %v246 = vand.u32 %v245, 4294901760
    %v247 = vsub.f32 %v245, %v246
    %v248 = vand.u32 %v247, 4294901760
    %249 = vmatpush1.msra.mxu0 %v248
    %250 = vmatprep.subr.mxu0 0.0
    %v251 = vand.u32 %v61, 4294901760
    %v252 = vsub.f32 %v61, %v251
    %v253 = vand.u32 %v252, 4294901760
    %v254 = vsub.f32 %v252, %v253
    %v255 = vand.u32 %v254, 4294901760
    %256 = vmatpush1.msra.mxu0 %v255
    %257 = vmatprep.subr.mxu0 0.0
    %v258 = vand.u32 %v60, 4294901760
    %v259 = vsub.f32 %v60, %v258
    %v260 = vand.u32 %v259, 4294901760
    %v261 = vsub.f32 %v259, %v260
    %v262 = vand.u32 %v261, 4294901760
    %263 = vmatpush1.msra.mxu0 %v262
    %264 = vmatprep.subr.mxu0 0.0
    %v265 = vand.u32 %v59, 4294901760
    %v266 = vsub.f32 %v59, %v265
    %v267 = vand.u32 %v266, 4294901760
    %v268 = vsub.f32 %v266, %v267
    %v269 = vand.u32 %v268, 4294901760
    %270 = vmatpush1.msra.mxu0 %v269
    %271 = vmatprep.subr.mxu0 0.0
    %v272 = vand.u32 %v58, 4294901760
    %v273 = vsub.f32 %v58, %v272
    %v274 = vand.u32 %v273, 4294901760
    %v275 = vsub.f32 %v273, %v274
    %v276 = vand.u32 %v275, 4294901760
    %277 = vmatpush1.msra.mxu0 %v276
    %278 = vmatprep.subr.mxu0 0.0
    %279 = vmatpush2.msra.mxu0 0.0
    %280 = vmatprep.subr.mxu0 0.0
    %281 = vmatpush2.msra.mxu0 0.0
    %282 = vmatprep.subr.mxu0 0.0
    %283 = vmatpush2.msra.mxu0 0.0
    %284 = vmatprep.subr.mxu0 0.0
    %285 = vmatpush2.msra.mxu0 0.0
    %286 = vmatprep.subr.mxu0 0.0
    %287 = vmatpush2.msra.mxu0 0.0
    %288 = vmatprep.subr.mxu0 0.0
    %289 = vmatpush2.msra.mxu0 0.0
    %290 = vmatprep.subr.mxu0 0.0
    %291 = vmatpush2.msra.mxu0 0.0
    %292 = vmatprep.subr.mxu0 0.0
    %293 = vmatpush2.msra.mxu0 0.0
    %294 = vmatprep.subr.mxu0 0.0
    %295 = vmatpush2.msra.mxu0 0.0
    %296 = vmatprep.subr.mxu0 0.0
    %297 = vmatpush2.msra.mxu0 0.0
    %298 = vmatprep.subr.mxu0 0.0
    %299 = vmatpush2.msra.mxu0 0.0
    %300 = vmatprep.subr.mxu0 0.0
    %301 = vmatpush2.msra.mxu0 0.0
    %302 = vmatprep.subr.mxu0 0.0
    %303 = vmatpush2.msra.mxu0 0.0
    %304 = vmatprep.subr.mxu0 0.0
    %305 = vmatpush2.msra.mxu0 0.0
    %306 = vmatprep.subr.mxu0 0.0
    %307 = vmatpush2.msra.mxu0 0.0
    %308 = vmatprep.subr.mxu0 0.0
    %309 = vmatpush2.msra.mxu0 0.0
    %310 = vmatprep.mubr.f32.mxu0 0.0
    %v311 = vand.u32 %v57, 4294901760
    %312 = vmatmul.mubr.f32.gmra.mxu0 %v311
    %v313 = vpop.f32.mrf.mxu0
    %v314 = vadd.f32 %v163, %v313
    %v315 = vpop.f32.mrf.mxu0
    %316 = vdwg.mxu0
    %317 = vmatprep.subr.mxu0 0.0
    %v318 = vand.u32 %v73, 4294901760
    %v319 = vsub.f32 %v73, %v318
    %320 = vmatpush1.msra.mxu0 %v319
    %321 = vmatprep.subr.mxu0 0.0
    %v322 = vand.u32 %v72, 4294901760
    %v323 = vsub.f32 %v72, %v322
    %324 = vmatpush1.msra.mxu0 %v323
    %325 = vmatprep.subr.mxu0 0.0
    %v326 = vand.u32 %v71, 4294901760
    %v327 = vsub.f32 %v71, %v326
    %328 = vmatpush1.msra.mxu0 %v327
    %329 = vmatprep.subr.mxu0 0.0
    %v330 = vand.u32 %v70, 4294901760
    %v331 = vsub.f32 %v70, %v330
    %332 = vmatpush1.msra.mxu0 %v331
    %333 = vmatprep.subr.mxu0 0.0
    %v334 = vand.u32 %v69, 4294901760
    %v335 = vsub.f32 %v69, %v334
    %336 = vmatpush1.msra.mxu0 %v335
    %337 = vmatprep.subr.mxu0 0.0
    %v338 = vand.u32 %v68, 4294901760
    %v339 = vsub.f32 %v68, %v338
    %340 = vmatpush1.msra.mxu0 %v339
    %341 = vmatprep.subr.mxu0 0.0
    %v342 = vand.u32 %v67, 4294901760
    %v343 = vsub.f32 %v67, %v342
    %344 = vmatpush1.msra.mxu0 %v343
    %345 = vmatprep.subr.mxu0 0.0
    %v346 = vand.u32 %v66, 4294901760
    %v347 = vsub.f32 %v66, %v346
    %348 = vmatpush1.msra.mxu0 %v347
    %349 = vmatprep.subr.mxu0 0.0
    %v350 = vand.u32 %v65, 4294901760
    %v351 = vsub.f32 %v65, %v350
    %352 = vmatpush1.msra.mxu0 %v351
    %353 = vmatprep.subr.mxu0 0.0
    %v354 = vand.u32 %v64, 4294901760
    %v355 = vsub.f32 %v64, %v354
    %356 = vmatpush1.msra.mxu0 %v355
    %357 = vmatprep.subr.mxu0 0.0
    %v358 = vand.u32 %v63, 4294901760
    %v359 = vsub.f32 %v63, %v358
    %360 = vmatpush1.msra.mxu0 %v359
    %361 = vmatprep.subr.mxu0 0.0
    %v362 = vand.u32 %v62, 4294901760
    %v363 = vsub.f32 %v62, %v362
    %364 = vmatpush1.msra.mxu0 %v363
    %365 = vmatprep.subr.mxu0 0.0
    %v366 = vand.u32 %v61, 4294901760
    %v367 = vsub.f32 %v61, %v366
    %368 = vmatpush1.msra.mxu0 %v367
    %369 = vmatprep.subr.mxu0 0.0
    %v370 = vand.u32 %v60, 4294901760
    %v371 = vsub.f32 %v60, %v370
    %372 = vmatpush1.msra.mxu0 %v371
    %373 = vmatprep.subr.mxu0 0.0
    %v374 = vand.u32 %v59, 4294901760
    %v375 = vsub.f32 %v59, %v374
    %376 = vmatpush1.msra.mxu0 %v375
    %377 = vmatprep.subr.mxu0 0.0
    %v378 = vand.u32 %v58, 4294901760
    %v379 = vsub.f32 %v58, %v378
    %380 = vmatpush1.msra.mxu0 %v379
    %381 = vmatprep.subr.mxu0 0.0
    %382 = vmatpush2.msra.mxu0 0.0
    %383 = vmatprep.subr.mxu0 0.0
    %384 = vmatpush2.msra.mxu0 0.0
    %385 = vmatprep.subr.mxu0 0.0
    %386 = vmatpush2.msra.mxu0 0.0
    %387 = vmatprep.subr.mxu0 0.0
    %388 = vmatpush2.msra.mxu0 0.0
    %389 = vmatprep.subr.mxu0 0.0
    %390 = vmatpush2.msra.mxu0 0.0
    %391 = vmatprep.subr.mxu0 0.0
    %392 = vmatpush2.msra.mxu0 0.0
    %393 = vmatprep.subr.mxu0 0.0
    %394 = vmatpush2.msra.mxu0 0.0
    %395 = vmatprep.subr.mxu0 0.0
    %396 = vmatpush2.msra.mxu0 0.0
    %397 = vmatprep.subr.mxu0 0.0
    %398 = vmatpush2.msra.mxu0 0.0
    %399 = vmatprep.subr.mxu0 0.0
    %400 = vmatpush2.msra.mxu0 0.0
    %401 = vmatprep.subr.mxu0 0.0
    %402 = vmatpush2.msra.mxu0 0.0
    %403 = vmatprep.subr.mxu0 0.0
    %404 = vmatpush2.msra.mxu0 0.0
    %405 = vmatprep.subr.mxu0 0.0
    %406 = vmatpush2.msra.mxu0 0.0
    %407 = vmatprep.subr.mxu0 0.0
    %408 = vmatpush2.msra.mxu0 0.0
    %409 = vmatprep.subr.mxu0 0.0
    %410 = vmatpush2.msra.mxu0 0.0
    %411 = vmatprep.subr.mxu0 0.0
    %412 = vmatpush2.msra.mxu0 0.0
    %413 = vmatprep.mubr.f32.mxu0 0.0
    %v414 = vand.u32 %v57, 4294901760
    %v415 = vsub.f32 %v57, %v414
    %416 = vmatmul.mubr.f32.gmra.mxu0 %v415
    %v417 = vpop.f32.mrf.mxu0
    %v418 = vadd.f32 %v314, %v417
    %v419 = vpop.f32.mrf.mxu0
    %420 = vdwg.mxu0
    %421 = vmatprep.subr.mxu0 0.0
    %v422 = vand.u32 %v73, 4294901760
    %423 = vmatpush1.msra.mxu0 %v422
    %424 = vmatprep.subr.mxu0 0.0
    %v425 = vand.u32 %v72, 4294901760
    %426 = vmatpush1.msra.mxu0 %v425
    %427 = vmatprep.subr.mxu0 0.0
    %v428 = vand.u32 %v71, 4294901760
    %429 = vmatpush1.msra.mxu0 %v428
    %430 = vmatprep.subr.mxu0 0.0
    %v431 = vand.u32 %v70, 4294901760
    %432 = vmatpush1.msra.mxu0 %v431
    %433 = vmatprep.subr.mxu0 0.0
    %v434 = vand.u32 %v69, 4294901760
    %435 = vmatpush1.msra.mxu0 %v434
    %436 = vmatprep.subr.mxu0 0.0
    %v437 = vand.u32 %v68, 4294901760
    %438 = vmatpush1.msra.mxu0 %v437
    %439 = vmatprep.subr.mxu0 0.0
    %v440 = vand.u32 %v67, 4294901760
    %441 = vmatpush1.msra.mxu0 %v440
    %442 = vmatprep.subr.mxu0 0.0
    %v443 = vand.u32 %v66, 4294901760
    %444 = vmatpush1.msra.mxu0 %v443
    %445 = vmatprep.subr.mxu0 0.0
    %v446 = vand.u32 %v65, 4294901760
    %447 = vmatpush1.msra.mxu0 %v446
    %448 = vmatprep.subr.mxu0 0.0
    %v449 = vand.u32 %v64, 4294901760
    %450 = vmatpush1.msra.mxu0 %v449
    %451 = vmatprep.subr.mxu0 0.0
    %v452 = vand.u32 %v63, 4294901760
    %453 = vmatpush1.msra.mxu0 %v452
    %454 = vmatprep.subr.mxu0 0.0
    %v455 = vand.u32 %v62, 4294901760
    %456 = vmatpush1.msra.mxu0 %v455
    %457 = vmatprep.subr.mxu0 0.0
    %v458 = vand.u32 %v61, 4294901760
    %459 = vmatpush1.msra.mxu0 %v458
    %460 = vmatprep.subr.mxu0 0.0
    %v461 = vand.u32 %v60, 4294901760
    %462 = vmatpush1.msra.mxu0 %v461
    %463 = vmatprep.subr.mxu0 0.0
    %v464 = vand.u32 %v59, 4294901760
    %465 = vmatpush1.msra.mxu0 %v464
    %466 = vmatprep.subr.mxu0 0.0
    %v467 = vand.u32 %v58, 4294901760
    %468 = vmatpush1.msra.mxu0 %v467
    %469 = vmatprep.subr.mxu0 0.0
    %470 = vmatpush2.msra.mxu0 0.0
    %471 = vmatprep.subr.mxu0 0.0
    %472 = vmatpush2.msra.mxu0 0.0
    %473 = vmatprep.subr.mxu0 0.0
    %474 = vmatpush2.msra.mxu0 0.0
    %475 = vmatprep.subr.mxu0 0.0
    %476 = vmatpush2.msra.mxu0 0.0
    %477 = vmatprep.subr.mxu0 0.0
    %478 = vmatpush2.msra.mxu0 0.0
    %479 = vmatprep.subr.mxu0 0.0
    %480 = vmatpush2.msra.mxu0 0.0
    %481 = vmatprep.subr.mxu0 0.0
    %482 = vmatpush2.msra.mxu0 0.0
    %483 = vmatprep.subr.mxu0 0.0
    %484 = vmatpush2.msra.mxu0 0.0
    %485 = vmatprep.subr.mxu0 0.0
    %486 = vmatpush2.msra.mxu0 0.0
    %487 = vmatprep.subr.mxu0 0.0
    %488 = vmatpush2.msra.mxu0 0.0
    %489 = vmatprep.subr.mxu0 0.0
    %490 = vmatpush2.msra.mxu0 0.0
    %491 = vmatprep.subr.mxu0 0.0
    %492 = vmatpush2.msra.mxu0 0.0
    %493 = vmatprep.subr.mxu0 0.0
    %494 = vmatpush2.msra.mxu0 0.0
    %495 = vmatprep.subr.mxu0 0.0
    %496 = vmatpush2.msra.mxu0 0.0
    %497 = vmatprep.subr.mxu0 0.0
    %498 = vmatpush2.msra.mxu0 0.0
    %499 = vmatprep.subr.mxu0 0.0
    %500 = vmatpush2.msra.mxu0 0.0
    %501 = vmatprep.mubr.f32.mxu0 0.0
    %v502 = vand.u32 %v57, 4294901760
    %v503 = vsub.f32 %v57, %v502
    %v504 = vand.u32 %v503, 4294901760
    %505 = vmatmul.mubr.f32.gmra.mxu0 %v504
    %v506 = vpop.f32.mrf.mxu0
    %v507 = vadd.f32 %v418, %v506
    %v508 = vpop.f32.mrf.mxu0
    %509 = vdwg.mxu0
    %510 = vmatprep.subr.mxu0 0.0
    %v511 = vand.u32 %v73, 4294901760
    %v512 = vsub.f32 %v73, %v511
    %v513 = vand.u32 %v512, 4294901760
    %514 = vmatpush1.msra.mxu0 %v513
    %515 = vmatprep.subr.mxu0 0.0
    %v516 = vand.u32 %v72, 4294901760
    %v517 = vsub.f32 %v72, %v516
    %v518 = vand.u32 %v517, 4294901760
    %519 = vmatpush1.msra.mxu0 %v518
    %520 = vmatprep.subr.mxu0 0.0
    %v521 = vand.u32 %v71, 4294901760
    %v522 = vsub.f32 %v71, %v521
    %v523 = vand.u32 %v522, 4294901760
    %524 = vmatpush1.msra.mxu0 %v523
    %525 = vmatprep.subr.mxu0 0.0
    %v526 = vand.u32 %v70, 4294901760
    %v527 = vsub.f32 %v70, %v526
    %v528 = vand.u32 %v527, 4294901760
    %529 = vmatpush1.msra.mxu0 %v528
    %530 = vmatprep.subr.mxu0 0.0
    %v531 = vand.u32 %v69, 4294901760
    %v532 = vsub.f32 %v69, %v531
    %v533 = vand.u32 %v532, 4294901760
    %534 = vmatpush1.msra.mxu0 %v533
    %535 = vmatprep.subr.mxu0 0.0
    %v536 = vand.u32 %v68, 4294901760
    %v537 = vsub.f32 %v68, %v536
    %v538 = vand.u32 %v537, 4294901760
    %539 = vmatpush1.msra.mxu0 %v538
    %540 = vmatprep.subr.mxu0 0.0
    %v541 = vand.u32 %v67, 4294901760
    %v542 = vsub.f32 %v67, %v541
    %v543 = vand.u32 %v542, 4294901760
    %544 = vmatpush1.msra.mxu0 %v543
    %545 = vmatprep.subr.mxu0 0.0
    %v546 = vand.u32 %v66, 4294901760
    %v547 = vsub.f32 %v66, %v546
    %v548 = vand.u32 %v547, 4294901760
    %549 = vmatpush1.msra.mxu0 %v548
    %550 = vmatprep.subr.mxu0 0.0
    %v551 = vand.u32 %v65, 4294901760
    %v552 = vsub.f32 %v65, %v551
    %v553 = vand.u32 %v552, 4294901760
    %554 = vmatpush1.msra.mxu0 %v553
    %555 = vmatprep.subr.mxu0 0.0
    %v556 = vand.u32 %v64, 4294901760
    %v557 = vsub.f32 %v64, %v556
    %v558 = vand.u32 %v557, 4294901760
    %559 = vmatpush1.msra.mxu0 %v558
    %560 = vmatprep.subr.mxu0 0.0
    %v561 = vand.u32 %v63, 4294901760
    %v562 = vsub.f32 %v63, %v561
    %v563 = vand.u32 %v562, 4294901760
    %564 = vmatpush1.msra.mxu0 %v563
    %565 = vmatprep.subr.mxu0 0.0
    %v566 = vand.u32 %v62, 4294901760
    %v567 = vsub.f32 %v62, %v566
    %v568 = vand.u32 %v567, 4294901760
    %569 = vmatpush1.msra.mxu0 %v568
    %570 = vmatprep.subr.mxu0 0.0
    %v571 = vand.u32 %v61, 4294901760
    %v572 = vsub.f32 %v61, %v571
    %v573 = vand.u32 %v572, 4294901760
    %574 = vmatpush1.msra.mxu0 %v573
    %575 = vmatprep.subr.mxu0 0.0
    %v576 = vand.u32 %v60, 4294901760
    %v577 = vsub.f32 %v60, %v576
    %v578 = vand.u32 %v577, 4294901760
    %579 = vmatpush1.msra.mxu0 %v578
    %580 = vmatprep.subr.mxu0 0.0
    %v581 = vand.u32 %v59, 4294901760
    %v582 = vsub.f32 %v59, %v581
    %v583 = vand.u32 %v582, 4294901760
    %584 = vmatpush1.msra.mxu0 %v583
    %585 = vmatprep.subr.mxu0 0.0
    %v586 = vand.u32 %v58, 4294901760
    %v587 = vsub.f32 %v58, %v586
    %v588 = vand.u32 %v587, 4294901760
    %589 = vmatpush1.msra.mxu0 %v588
    %590 = vmatprep.subr.mxu0 0.0
    %591 = vmatpush2.msra.mxu0 0.0
    %592 = vmatprep.subr.mxu0 0.0
    %593 = vmatpush2.msra.mxu0 0.0
    %594 = vmatprep.subr.mxu0 0.0
    %595 = vmatpush2.msra.mxu0 0.0
    %596 = vmatprep.subr.mxu0 0.0
    %597 = vmatpush2.msra.mxu0 0.0
    %598 = vmatprep.subr.mxu0 0.0
    %599 = vmatpush2.msra.mxu0 0.0
    %600 = vmatprep.subr.mxu0 0.0
    %601 = vmatpush2.msra.mxu0 0.0
    %602 = vmatprep.subr.mxu0 0.0
    %603 = vmatpush2.msra.mxu0 0.0
    %604 = vmatprep.subr.mxu0 0.0
    %605 = vmatpush2.msra.mxu0 0.0
    %606 = vmatprep.subr.mxu0 0.0
    %607 = vmatpush2.msra.mxu0 0.0
    %608 = vmatprep.subr.mxu0 0.0
    %609 = vmatpush2.msra.mxu0 0.0
    %610 = vmatprep.subr.mxu0 0.0
    %611 = vmatpush2.msra.mxu0 0.0
    %612 = vmatprep.subr.mxu0 0.0
    %613 = vmatpush2.msra.mxu0 0.0
    %614 = vmatprep.subr.mxu0 0.0
    %615 = vmatpush2.msra.mxu0 0.0
    %616 = vmatprep.subr.mxu0 0.0
    %617 = vmatpush2.msra.mxu0 0.0
    %618 = vmatprep.subr.mxu0 0.0
    %619 = vmatpush2.msra.mxu0 0.0
    %620 = vmatprep.subr.mxu0 0.0
    %621 = vmatpush2.msra.mxu0 0.0
    %622 = vmatprep.mubr.f32.mxu0 0.0
    %v623 = vand.u32 %v57, 4294901760
    %624 = vmatmul.mubr.f32.gmra.mxu0 %v623
    %v625 = vpop.f32.mrf.mxu0
    %v626 = vadd.f32 %v507, %v625
    %v627 = vpop.f32.mrf.mxu0
    %628 = vdwg.mxu0
    %629 = vmatprep.subr.mxu0 0.0
    %v630 = vand.u32 %v73, 4294901760
    %631 = vmatpush1.msra.mxu0 %v630
    %632 = vmatprep.subr.mxu0 0.0
    %v633 = vand.u32 %v72, 4294901760
    %634 = vmatpush1.msra.mxu0 %v633
    %635 = vmatprep.subr.mxu0 0.0
    %v636 = vand.u32 %v71, 4294901760
    %637 = vmatpush1.msra.mxu0 %v636
    %638 = vmatprep.subr.mxu0 0.0
    %v639 = vand.u32 %v70, 4294901760
    %640 = vmatpush1.msra.mxu0 %v639
    %641 = vmatprep.subr.mxu0 0.0
    %v642 = vand.u32 %v69, 4294901760
    %643 = vmatpush1.msra.mxu0 %v642
    %644 = vmatprep.subr.mxu0 0.0
    %v645 = vand.u32 %v68, 4294901760
    %646 = vmatpush1.msra.mxu0 %v645
    %647 = vmatprep.subr.mxu0 0.0
    %v648 = vand.u32 %v67, 4294901760
    %649 = vmatpush1.msra.mxu0 %v648
    %650 = vmatprep.subr.mxu0 0.0
    %v651 = vand.u32 %v66, 4294901760
    %652 = vmatpush1.msra.mxu0 %v651
    %653 = vmatprep.subr.mxu0 0.0
    %v654 = vand.u32 %v65, 4294901760
    %655 = vmatpush1.msra.mxu0 %v654
    %656 = vmatprep.subr.mxu0 0.0
    %v657 = vand.u32 %v64, 4294901760
    %658 = vmatpush1.msra.mxu0 %v657
    %659 = vmatprep.subr.mxu0 0.0
    %v660 = vand.u32 %v63, 4294901760
    %661 = vmatpush1.msra.mxu0 %v660
    %662 = vmatprep.subr.mxu0 0.0
    %v663 = vand.u32 %v62, 4294901760
    %664 = vmatpush1.msra.mxu0 %v663
    %665 = vmatprep.subr.mxu0 0.0
    %v666 = vand.u32 %v61, 4294901760
    %667 = vmatpush1.msra.mxu0 %v666
    %668 = vmatprep.subr.mxu0 0.0
    %v669 = vand.u32 %v60, 4294901760
    %670 = vmatpush1.msra.mxu0 %v669
    %671 = vmatprep.subr.mxu0 0.0
    %v672 = vand.u32 %v59, 4294901760
    %673 = vmatpush1.msra.mxu0 %v672
    %674 = vmatprep.subr.mxu0 0.0
    %v675 = vand.u32 %v58, 4294901760
    %676 = vmatpush1.msra.mxu0 %v675
    %677 = vmatprep.subr.mxu0 0.0
    %678 = vmatpush2.msra.mxu0 0.0
    %679 = vmatprep.subr.mxu0 0.0
    %680 = vmatpush2.msra.mxu0 0.0
    %681 = vmatprep.subr.mxu0 0.0
    %682 = vmatpush2.msra.mxu0 0.0
    %683 = vmatprep.subr.mxu0 0.0
    %684 = vmatpush2.msra.mxu0 0.0
    %685 = vmatprep.subr.mxu0 0.0
    %686 = vmatpush2.msra.mxu0 0.0
    %687 = vmatprep.subr.mxu0 0.0
    %688 = vmatpush2.msra.mxu0 0.0
    %689 = vmatprep.subr.mxu0 0.0
    %690 = vmatpush2.msra.mxu0 0.0
    %691 = vmatprep.subr.mxu0 0.0
    %692 = vmatpush2.msra.mxu0 0.0
    %693 = vmatprep.subr.mxu0 0.0
    %694 = vmatpush2.msra.mxu0 0.0
    %695 = vmatprep.subr.mxu0 0.0
    %696 = vmatpush2.msra.mxu0 0.0
    %697 = vmatprep.subr.mxu0 0.0
    %698 = vmatpush2.msra.mxu0 0.0
    %699 = vmatprep.subr.mxu0 0.0
    %700 = vmatpush2.msra.mxu0 0.0
    %701 = vmatprep.subr.mxu0 0.0
    %702 = vmatpush2.msra.mxu0 0.0
    %703 = vmatprep.subr.mxu0 0.0
    %704 = vmatpush2.msra.mxu0 0.0
    %705 = vmatprep.subr.mxu0 0.0
    %706 = vmatpush2.msra.mxu0 0.0
    %707 = vmatprep.subr.mxu0 0.0
    %708 = vmatpush2.msra.mxu0 0.0
    %709 = vmatprep.mubr.f32.mxu0 0.0
    %v710 = vand.u32 %v57, 4294901760
    %711 = vmatmul.mubr.f32.gmra.mxu0 %v710
    %v712 = vpop.f32.mrf.mxu0
    %v713 = vadd.f32 %v626, %v712
    %v714 = vpop.f32.mrf.mxu0
    %715 = vdwg.mxu0
    %v716 = vtanh.pop %v713
    %v717 = vmul.f32 %v716, 0.1
    %v718 = vadd.f32 %v57, %v717
    %719 = vst [vmem:[#allocation9] sm:$0xff] %v718
    %720 = vst [vmem:[#allocation2] sm:$0xff] %v718
    // Predicated region
    $region27: #{tpu_custom_call.1} parent=1 // pred_check
      _
    $region28: #{tpu_custom_call.1} parent=1 // pred_check_branch
      %722 = sbr.rel (0) target = $region30
    $region29: #{tpu_custom_call.1} parent=1 // pred_region
      %s724 = ssub.s32 128, 128
      %725 = vsyncadd [#allocation6], %s724
      %s727 = sshll.u32 [#allocation9], 4
      %s728 = int_to_ptr.vmem [resolvable:$true] %s727
      %730 = dma.vmem_to_hbm [thread:$0]  %s728, 128, %s3, [#allocation6]
    $region30: #{tpu_custom_call.1} parent=1 // pred_fallthru
      _
    // Predicated region
    $region31: #{tpu_custom_call.1} parent=1 // pred_check
      _
    $region32: #{tpu_custom_call.1} parent=1 // pred_check_branch
      %732 = sbr.rel (0) target = $region34
    $region33: #{tpu_custom_call.1} parent=1 // pred_region
      %733 = dma.done [#allocation6], 128
    $region34: #{tpu_custom_call.1} parent=1 // pred_fallthru
      _
    %734 = vsyncpa [#allocation5], 1
    %735 = vsyncpa [#allocation8], 1
    %736 = vsyncpa [#allocation6], 1

</llo_original>
